<compile_context>
chip_gen: v7x
topology: tpu7x:2x2x1
jax: 0.10.0
libtpu: 0.0.40
codegen_flags: <defaults>
</compile_context>

<pallas_src>
import math
import functools

import jax
import jax.numpy as jnp
import numpy as np
from jax.experimental import pallas as pl
from jax.experimental.pallas import tpu as pltpu

EPS = 1e-6


def _softmax(s):
    # f32 in / f32 out; divide moved to the EUP approx-reciprocal slot.
    m = jnp.max(s, axis=-1, keepdims=True)
    e = jnp.exp(s - m)
    return e * pl.reciprocal(jnp.sum(e, axis=-1, keepdims=True), approx=True)


def diff_attn_kernel(xq_ref, xkv_ref, wq_ref, wkv_ref, wo_ref, lam_ref, o_ref,
                     kvh_ref, hout_ref, ssq_ref):
    # xq_ref:   (1, Tq, Dm)   query rows of the current batch element (f32)
    # xkv_ref:  (1, S,  Dm)   full context rows of the current batch element (f32)
    # wq_ref:   (H, Dm, 2*Dh) per-head [q1|q2] weights, 1/sqrt(Dh) folded (bf16)
    # wkv_ref:  (H, Dm, 3*Dh) per-head [k1|k2|v] weights (bf16)
    # wo_ref:   (H*Dh, Dm)    output projection, norm_scale * (1 - mean(lam)) folded (bf16)
    # lam_ref:  (H,) SMEM     lambda_param (f32)
    # o_ref:    (1, Tq, Dm)
    # kvh_ref:  (H, S, 3*Dh)  bf16 scratch: cached K1/K2/V, reused across query tiles
    # hout_ref: (H, Tq, Dh)   bf16 scratch: per-head attention outputs
    # ssq_ref:  (Tq, 1)       f32 scratch: per-row sum of squares (RMSNorm)
    H = wq_ref.shape[0]
    Dh = wq_ref.shape[2] // 2
    qi = pl.program_id(1)

    # ---- K1/K2/V projections: once per batch element, cached across q tiles ----
    @pl.when(qi == 0)
    def _():
        xkv = xkv_ref[0].astype(jnp.bfloat16)                       # (S, Dm)

        def kv_body(h, carry):
            # (S, Dm) @ (Dm, 3*Dh): K = d_model, head on a leading axis.
            kvh_ref[h] = jnp.dot(
                xkv, wkv_ref[h],
                preferred_element_type=jnp.float32).astype(jnp.bfloat16)
            return carry

        jax.lax.fori_loop(0, H, kv_body, 0)

    xq = xq_ref[0].astype(jnp.bfloat16)                             # (Tq, Dm)
    ssq_ref[...] = jnp.zeros_like(ssq_ref)

    dn = (((1,), (1,)), ((), ()))                                   # q @ k^T

    def head_body(h, carry):
        # Per-head Q projection (1/sqrt(Dh) already folded into the weights).
        qh = jnp.dot(xq, wq_ref[h], preferred_element_type=jnp.float32)   # (Tq, 2*Dh)
        q1 = qh[:, :Dh].astype(jnp.bfloat16)
        q2 = qh[:, Dh:].astype(jnp.bfloat16)

        kvh = kvh_ref[h]                                            # (S, 3*Dh) bf16
        k1 = kvh[:, 0 * Dh:1 * Dh]
        k2 = kvh[:, 1 * Dh:2 * Dh]
        v = kvh[:, 2 * Dh:3 * Dh]

        s1 = jax.lax.dot_general(q1, k1, dn, preferred_element_type=jnp.float32)
        s2 = jax.lax.dot_general(q2, k2, dn, preferred_element_type=jnp.float32)

        a1 = _softmax(s1)                                           # (Tq, S) f32
        a2 = _softmax(s2)

        lam_h = lam_ref[h]
        # Third softmax: input a1 - lam*a2 is bounded in [-lam, 1] -> no max-subtract
        # needed; exact divide on this output-facing normalization.
        e = jnp.exp(a1 - lam_h * a2)
        aw = e / jnp.sum(e, axis=-1, keepdims=True)

        head_out = jnp.dot(aw.astype(jnp.bfloat16), v,
                           preferred_element_type=jnp.float32)      # (Tq, Dh) f32

        ssq_ref[...] += jnp.sum(head_out * head_out, axis=-1, keepdims=True)
        hout_ref[h] = head_out.astype(jnp.bfloat16)
        return carry

    jax.lax.fori_loop(0, H, head_body, 0)

    # One lane-wide (Tq, H*Dh) @ (H*Dh, Dm) output projection (K = d_model); the
    # RMSNorm scale and (1 - mean(lambda)) are folded into wo in the wrapper, the
    # per-row 1/rms factor commutes with the matmul and is applied afterwards.
    wide = jnp.concatenate([hout_ref[h] for h in range(H)], axis=-1)      # (Tq, H*Dh) bf16
    y = jnp.dot(wide, wo_ref[...], preferred_element_type=jnp.float32)    # (Tq, Dm) f32

    inv_rms = jax.lax.rsqrt(ssq_ref[...] * (1.0 / (H * Dh)) + EPS)        # (Tq, 1) f32
    o_ref[0] = (y * inv_rms).astype(o_ref.dtype)


def _pick_q_tile(S):
    for t in (512, 256, 128, 64, 32, 16, 8):
        if S % t == 0:
            return t
    return S


def differential_attention(x, params, n_heads, d_head, q_tile=None):
    B, S, Dm = x.shape
    H, Dh = n_heads, d_head
    HDh = H * Dh
    assert HDh == Dm, \
        "TODO(synk): RMSNorm pad/truncate path (n_heads*d_head != d_model) not implemented"

    if q_tile is None:
        q_tile = _pick_q_tile(S)
    assert S % q_tile == 0, "q_tile must divide the sequence length"
    Tq = q_tile
    num_qt = S // Tq

    wq, wk, wv, wo = params["wq"], params["wk"], params["wv"], params["wo"]
    norm_scale, lam = params["norm_scale"], params["lam"]
    lam = lam.astype(jnp.float32)

    # ---- head-leading per-head weights (K = d_model, no lane straddling) ----
    inv_sqrt_dh = 1.0 / math.sqrt(Dh)
    wq_h = jnp.transpose(wq.reshape(H, 2, Dh, Dm), (0, 3, 1, 2)).reshape(H, Dm, 2 * Dh)
    wq_h = (wq_h * inv_sqrt_dh).astype(jnp.bfloat16)          # 1/sqrt(Dh) folded into Q
    wk_h = jnp.transpose(wk.reshape(H, 2, Dh, Dm), (0, 3, 1, 2)).reshape(H, Dm, 2 * Dh)
    wv_h = jnp.transpose(wv.reshape(H, Dh, Dm), (0, 2, 1))    # (H, Dm, Dh)
    wkv_h = jnp.concatenate([wk_h, wv_h], axis=-1).astype(jnp.bfloat16)   # (H, Dm, 3*Dh)

    # Output projection with RMSNorm scale and (1 - mean(lambda)) folded in.
    wo_folded = (((1.0 - jnp.mean(lam)) * norm_scale)[:, None] * wo.T).astype(jnp.bfloat16)

    # ---- VMEM budget: conservative 40 MiB target (v7x-safe), live-set assert ----
    f32b, bf16b = 4, 2
    weight_bytes = (H * Dm * 2 * Dh + H * Dm * 3 * Dh + HDh * Dm) * bf16b
    est = (
        2 * (Tq * Dm + S * Dm + Tq * Dm) * f32b        # double-buffered x_q / x_kv / out tiles
        + 2 * weight_bytes                             # weights (TODO(synk): pl.Buffered(1))
        + (H * S * 3 * Dh + H * Tq * Dh) * bf16b       # KV cache + head-output scratches
        + Tq * 128 * f32b                              # ssq scratch (lane padded)
        + (S * Dm + Tq * Dm) * bf16b                   # bf16 copies of x_kv / x_q
        + 6 * Tq * S * f32b                            # ONE head's (Tq, S) score/softmax temps
        + (Tq * 2 * Dh + S * 3 * Dh + Tq * Dh) * f32b  # per-head f32 projection temporaries
        + 2 * Tq * Dm * f32b                           # o_proj result + store staging
    )
    budget = 40 * 2 ** 20
    assert est <= budget, (
        f"per-step VMEM live set ~{est / 2**20:.1f} MiB exceeds {budget / 2**20:.0f} MiB; "
        "use a smaller q_tile (or add K/S tiling)")
    vmem_limit = int(min(max(2 * est, 32 * 2 ** 20), budget))

    return pl.pallas_call(
        diff_attn_kernel,
        out_shape=jax.ShapeDtypeStruct((B, S, Dm), x.dtype),
        grid_spec=pltpu.PrefetchScalarGridSpec(
            num_scalar_prefetch=0,
            grid=(B, num_qt),
            in_specs=[
                pl.BlockSpec((1, Tq, Dm), lambda b, qi: (b, qi, 0)),      # query rows
                pl.BlockSpec((1, S, Dm), lambda b, qi: (b, 0, 0)),        # context rows (K/V)
                pl.BlockSpec((H, Dm, 2 * Dh), lambda b, qi: (0, 0, 0)),   # Q weights
                pl.BlockSpec((H, Dm, 3 * Dh), lambda b, qi: (0, 0, 0)),   # K/V weights
                pl.BlockSpec((HDh, Dm), lambda b, qi: (0, 0)),            # folded o_proj
                pl.BlockSpec(memory_space=pltpu.MemorySpace.SMEM),        # lambda
            ],
            out_specs=pl.BlockSpec((1, Tq, Dm), lambda b, qi: (b, qi, 0)),
            scratch_shapes=[
                pltpu.VMEM((H, S, 3 * Dh), jnp.bfloat16),   # cached K1/K2/V per head
                pltpu.VMEM((H, Tq, Dh), jnp.bfloat16),      # per-head attention outputs
                pltpu.VMEM((Tq, 1), jnp.float32),           # row sum-of-squares
            ],
        ),
        compiler_params=pltpu.CompilerParams(
            # batch parallel (megacore); q-tile axis is sequential ("arbitrary", last)
            # because the K/V scratch is carried across query tiles of a batch element.
            dimension_semantics=("parallel", "arbitrary"),
            vmem_limit_bytes=vmem_limit,
        ),
    )(x, x, wq_h, wkv_h, wo_folded, lam)


def reference_forward(x, params, n_heads, d_head):
    """Pure-JAX f32 mirror of the PyTorch DifferentialAttention (eval, context/mask=None)."""
    B, S, Dm = x.shape
    H, Dh = n_heads, d_head
    wq, wk, wv, wo = params["wq"], params["wk"], params["wv"], params["wo"]
    norm_scale, lam = params["norm_scale"], params["lam"]

    q = (x @ wq.T).reshape(B, S, H, 2, Dh)
    k = (x @ wk.T).reshape(B, S, H, 2, Dh)
    v = (x @ wv.T).reshape(B, S, H, Dh)
    q1, q2 = q[..., 0, :], q[..., 1, :]
    k1, k2 = k[..., 0, :], k[..., 1, :]
    q1, q2 = q1.transpose(0, 2, 1, 3), q2.transpose(0, 2, 1, 3)
    k1, k2 = k1.transpose(0, 2, 1, 3), k2.transpose(0, 2, 1, 3)
    v = v.transpose(0, 2, 1, 3)
    scale = 1.0 / math.sqrt(Dh)
    s1 = jnp.einsum("bhqd,bhkd->bhqk", q1, k1) * scale
    s2 = jnp.einsum("bhqd,bhkd->bhqk", q2, k2) * scale
    a1 = jax.nn.softmax(s1, axis=-1)
    a2 = jax.nn.softmax(s2, axis=-1)
    aw = jax.nn.softmax(a1 - lam.reshape(1, H, 1, 1) * a2, axis=-1)
    out = jnp.einsum("bhqk,bhkd->bhqd", aw, v)
    out = out.transpose(0, 2, 1, 3).reshape(B, S, H * Dh)
    rms = jnp.sqrt(jnp.mean(out ** 2, axis=-1, keepdims=True) + EPS)
    out = out / rms * norm_scale
    out = out * (1.0 - jnp.mean(lam))
    return out @ wo.T


if __name__ == "__main__":
    B, S = 2, 8
    n_heads, d_head = 4, 8
    d_model = n_heads * d_head  # 32

    key = jax.random.PRNGKey(0)
    k0, k1, k2, k3, k4 = jax.random.split(key, 5)

    x = jax.random.normal(k0, (B, S, d_model), dtype=jnp.float32)
    params = {
        "wq": jax.random.normal(k1, (2 * d_head * n_heads, d_model), jnp.float32) * 0.05,
        "wk": jax.random.normal(k2, (2 * d_head * n_heads, d_model), jnp.float32) * 0.05,
        "wv": jax.random.normal(k3, (d_head * n_heads, d_model), jnp.float32) * 0.05,
        "wo": jax.random.normal(k4, (d_model, d_head * n_heads), jnp.float32) * 0.05,
        "norm_scale": jnp.ones((d_model,), jnp.float32),   # RMSNorm.scale
        "lam": jnp.full((n_heads,), 0.8, jnp.float32),     # lambda_param init
    }

    run = jax.jit(functools.partial(differential_attention,
                                    n_heads=n_heads, d_head=d_head))
    out = jax.block_until_ready(run(x, params))

    ref = reference_forward(x, params, n_heads, d_head)
    # bf16 MXU operands + EUP approx reciprocal/rsqrt => bf16-level tolerance.
    np.testing.assert_allclose(np.asarray(out), np.asarray(ref), rtol=2e-2, atol=2e-2)

    print("KERNEL_OK")
</pallas_src>

<mosaic_0001>
module attributes {stable_mosaic.version = 11 : i64} {
  func.func @diff_attn_kernel(%arg0: i32, %arg1: i32, %arg2: memref<1x8x32xf32, #tpu.memory_space<vmem>>, %arg3: memref<1x8x32xf32, #tpu.memory_space<vmem>>, %arg4: memref<4x32x16xbf16, #tpu.memory_space<vmem>>, %arg5: memref<4x32x24xbf16, #tpu.memory_space<vmem>>, %arg6: memref<32x32xbf16, #tpu.memory_space<vmem>>, %arg7: memref<4xf32, #tpu.memory_space<smem>>, %arg8: memref<1x8x32xf32, #tpu.memory_space<vmem>>, %arg9: memref<4x8x24xbf16, #tpu.memory_space<vmem>>, %arg10: memref<4x8x8xbf16, #tpu.memory_space<vmem>>, %arg11: memref<8x1xf32, #tpu.memory_space<vmem>>) attributes {dimension_semantics = [#tpu.dimension_semantics<parallel>, #tpu.dimension_semantics<arbitrary>], iteration_bounds = array<i64: 2, 1>, scalar_prefetch = 0 : i64, scratch_operands = 3 : i64, tpu.core_type = #tpu.core_type<tc>, window_params = [{transform_indices = @transform_0, window_bounds = array<i64: 1, 8, 32>}, {transform_indices = @transform_1, window_bounds = array<i64: 1, 8, 32>}, {pipeline_mode = #tpu.pipeline_mode<synchronous>, transform_indices = @transform_2, window_bounds = array<i64: 4, 32, 16>}, {pipeline_mode = #tpu.pipeline_mode<synchronous>, transform_indices = @transform_3, window_bounds = array<i64: 4, 32, 24>}, {pipeline_mode = #tpu.pipeline_mode<synchronous>, transform_indices = @transform_4, window_bounds = array<i64: 32, 32>}, {transform_indices = @transform_5, window_bounds = array<i64: 4>}, {transform_indices = @transform_6, window_bounds = array<i64: 1, 8, 32>}]} {
    %c0_i32 = arith.constant 0 : i32
    %0 = arith.cmpi eq, %arg1, %c0_i32 : i32
    %1 = arith.extui %0 : i1 to i32
    %c0_i32_0 = arith.constant 0 : i32
    %2 = arith.cmpi ne, %1, %c0_i32_0 : i32
    scf.if %2 {
      %c0_26 = arith.constant 0 : index
      %c0_27 = arith.constant 0 : index
      %c0_28 = arith.constant 0 : index
      %31 = vector.load %arg3[%c0_26, %c0_27, %c0_28] : memref<1x8x32xf32, #tpu.memory_space<vmem>>, vector<1x8x32xf32>
      %32 = vector.shape_cast %31 : vector<1x8x32xf32> to vector<8x32xf32>
      %33 = arith.truncf %32 : vector<8x32xf32> to vector<8x32xbf16>
      %c0_i32_29 = arith.constant 0 : i32
      %c4_i32_30 = arith.constant 4 : i32
      %34 = arith.addi %c0_i32_29, %c4_i32_30 : i32
      %c1_i32_31 = arith.constant 1 : i32
      scf.for %arg12 = %c0_i32_29 to %34 step %c1_i32_31  : i32 {
        %35 = arith.index_cast %arg12 : i32 to index
        %c0_33 = arith.constant 0 : index
        %c0_34 = arith.constant 0 : index
        %36 = vector.load %arg5[%35, %c0_33, %c0_34] : memref<4x32x24xbf16, #tpu.memory_space<vmem>>, vector<1x32x24xbf16>
        %37 = vector.shape_cast %36 : vector<1x32x24xbf16> to vector<32x24xbf16>
        %cst_35 = arith.constant dense<0.000000e+00> : vector<8x24xf32>
        %38 = tpu.matmul %33, %37, %cst_35 {dimension_numbers = #tpu.dot_dimension_numbers<[1], [0], [0], [1], [0, 0, 1, 1], [], []>} : vector<8x32xbf16>, vector<32x24xbf16>, vector<8x24xf32> -> vector<8x24xf32>
        %39 = arith.truncf %38 : vector<8x24xf32> to vector<8x24xbf16>
        %40 = arith.index_cast %arg12 : i32 to index
        %c0_36 = arith.constant 0 : index
        %c0_37 = arith.constant 0 : index
        %41 = vector.load %arg9[%40, %c0_36, %c0_37] : memref<4x8x24xbf16, #tpu.memory_space<vmem>>, vector<1x8x24xbf16>
        %42 = vector.shape_cast %41 : vector<1x8x24xbf16> to vector<8x24xbf16>
        %43 = vector.shape_cast %39 : vector<8x24xbf16> to vector<1x8x24xbf16>
        tpu.vector_store %arg9[%40, %c0_36, %c0_37], %43 {strides = array<i32>} : memref<4x8x24xbf16, #tpu.memory_space<vmem>>, vector<1x8x24xbf16>,
      }
      %c4_i32_32 = arith.constant 4 : i32
    } else {
    }
    %c0 = arith.constant 0 : index
    %c0_1 = arith.constant 0 : index
    %c0_2 = arith.constant 0 : index
    %3 = vector.load %arg2[%c0, %c0_1, %c0_2] : memref<1x8x32xf32, #tpu.memory_space<vmem>>, vector<1x8x32xf32>
    %4 = vector.shape_cast %3 : vector<1x8x32xf32> to vector<8x32xf32>
    %5 = arith.truncf %4 : vector<8x32xf32> to vector<8x32xbf16>
    %cst = arith.constant 0.000000e+00 : f32
    %6 = vector.broadcast %cst : f32 to vector<8x1xf32>
    %c0_3 = arith.constant 0 : index
    %c0_4 = arith.constant 0 : index
    %7 = vector.load %arg11[%c0_3, %c0_4] : memref<8x1xf32, #tpu.memory_space<vmem>>, vector<8x1xf32>
    tpu.vector_store %arg11[%c0_3, %c0_4], %6 {strides = array<i32>} : memref<8x1xf32, #tpu.memory_space<vmem>>, vector<8x1xf32>,
    %c0_i32_5 = arith.constant 0 : i32
    %c4_i32 = arith.constant 4 : i32
    %8 = arith.addi %c0_i32_5, %c4_i32 : i32
    %c1_i32 = arith.constant 1 : i32
    scf.for %arg12 = %c0_i32_5 to %8 step %c1_i32  : i32 {
      %31 = arith.index_cast %arg12 : i32 to index
      %c0_26 = arith.constant 0 : index
      %c0_27 = arith.constant 0 : index
      %32 = vector.load %arg4[%31, %c0_26, %c0_27] : memref<4x32x16xbf16, #tpu.memory_space<vmem>>, vector<1x32x16xbf16>
      %33 = vector.shape_cast %32 : vector<1x32x16xbf16> to vector<32x16xbf16>
      %cst_28 = arith.constant dense<0.000000e+00> : vector<8x16xf32>
      %34 = tpu.matmul %5, %33, %cst_28 {dimension_numbers = #tpu.dot_dimension_numbers<[1], [0], [0], [1], [0, 0, 1, 1], [], []>} : vector<8x32xbf16>, vector<32x16xbf16>, vector<8x16xf32> -> vector<8x16xf32>
      %35 = vector.extract_strided_slice %34 {offsets = [0, 0], sizes = [8, 8], strides = [1, 1]} : vector<8x16xf32> to vector<8x8xf32>
      %36 = arith.truncf %35 : vector<8x8xf32> to vector<8x8xbf16>
      %37 = vector.extract_strided_slice %34 {offsets = [0, 8], sizes = [8, 8], strides = [1, 1]} : vector<8x16xf32> to vector<8x8xf32>
      %38 = arith.truncf %37 : vector<8x8xf32> to vector<8x8xbf16>
      %39 = arith.index_cast %arg12 : i32 to index
      %c0_29 = arith.constant 0 : index
      %c0_30 = arith.constant 0 : index
      %40 = vector.load %arg9[%39, %c0_29, %c0_30] : memref<4x8x24xbf16, #tpu.memory_space<vmem>>, vector<1x8x24xbf16>
      %41 = vector.shape_cast %40 : vector<1x8x24xbf16> to vector<8x24xbf16>
      %42 = vector.extract_strided_slice %41 {offsets = [0, 0], sizes = [8, 8], strides = [1, 1]} : vector<8x24xbf16> to vector<8x8xbf16>
      %43 = vector.extract_strided_slice %41 {offsets = [0, 8], sizes = [8, 8], strides = [1, 1]} : vector<8x24xbf16> to vector<8x8xbf16>
      %44 = vector.extract_strided_slice %41 {offsets = [0, 16], sizes = [8, 8], strides = [1, 1]} : vector<8x24xbf16> to vector<8x8xbf16>
      %cst_31 = arith.constant dense<0.000000e+00> : vector<8x8xf32>
      %45 = tpu.matmul %36, %42, %cst_31 {dimension_numbers = #tpu.dot_dimension_numbers<[1], [1], [0], [0], [0, 0, 1, 0], [], []>} : vector<8x8xbf16>, vector<8x8xbf16>, vector<8x8xf32> -> vector<8x8xf32>
      %cst_32 = arith.constant dense<0.000000e+00> : vector<8x8xf32>
      %46 = tpu.matmul %38, %43, %cst_32 {dimension_numbers = #tpu.dot_dimension_numbers<[1], [1], [0], [0], [0, 0, 1, 0], [], []>} : vector<8x8xbf16>, vector<8x8xbf16>, vector<8x8xf32> -> vector<8x8xf32>
      %cst_33 = arith.constant dense<0xFF800000> : vector<8xf32>
      %47 = vector.multi_reduction <maximumf>, %45, %cst_33 [1] : vector<8x8xf32> to vector<8xf32>
      %48 = vector.shape_cast %47 : vector<8xf32> to vector<8x1xf32>
      %49 = vector.broadcast %48 : vector<8x1xf32> to vector<8x8xf32>
      %50 = arith.subf %45, %49 : vector<8x8xf32>
      %51 = math.exp %50 : vector<8x8xf32>
      %cst_34 = arith.constant dense<0.000000e+00> : vector<8xf32>
      %52 = vector.multi_reduction <add>, %51, %cst_34 [1] : vector<8x8xf32> to vector<8xf32>
      %53 = vector.shape_cast %52 : vector<8xf32> to vector<8x1xf32>
      %54 = tpu.reciprocal %53 {approx = true} : vector<8x1xf32> -> vector<8x1xf32>
      %55 = vector.broadcast %54 : vector<8x1xf32> to vector<8x8xf32>
      %56 = arith.mulf %51, %55 : vector<8x8xf32>
      %cst_35 = arith.constant dense<0xFF800000> : vector<8xf32>
      %57 = vector.multi_reduction <maximumf>, %46, %cst_35 [1] : vector<8x8xf32> to vector<8xf32>
      %58 = vector.shape_cast %57 : vector<8xf32> to vector<8x1xf32>
      %59 = vector.broadcast %58 : vector<8x1xf32> to vector<8x8xf32>
      %60 = arith.subf %46, %59 : vector<8x8xf32>
      %61 = math.exp %60 : vector<8x8xf32>
      %cst_36 = arith.constant dense<0.000000e+00> : vector<8xf32>
      %62 = vector.multi_reduction <add>, %61, %cst_36 [1] : vector<8x8xf32> to vector<8xf32>
      %63 = vector.shape_cast %62 : vector<8xf32> to vector<8x1xf32>
      %64 = tpu.reciprocal %63 {approx = true} : vector<8x1xf32> -> vector<8x1xf32>
      %65 = vector.broadcast %64 : vector<8x1xf32> to vector<8x8xf32>
      %66 = arith.mulf %61, %65 : vector<8x8xf32>
      %67 = arith.index_cast %arg12 : i32 to index
      %68 = memref.load %arg7[%67] : memref<4xf32, #tpu.memory_space<smem>>
      %69 = vector.broadcast %68 : f32 to vector<8x8xf32>
      %70 = arith.mulf %69, %66 : vector<8x8xf32>
      %71 = arith.subf %56, %70 : vector<8x8xf32>
      %72 = math.exp %71 : vector<8x8xf32>
      %cst_37 = arith.constant dense<0.000000e+00> : vector<8xf32>
      %73 = vector.multi_reduction <add>, %72, %cst_37 [1] : vector<8x8xf32> to vector<8xf32>
      %74 = vector.shape_cast %73 : vector<8xf32> to vector<8x1xf32>
      %75 = vector.broadcast %74 : vector<8x1xf32> to vector<8x8xf32>
      %76 = arith.divf %72, %75 : vector<8x8xf32>
      %77 = arith.truncf %76 : vector<8x8xf32> to vector<8x8xbf16>
      %cst_38 = arith.constant dense<0.000000e+00> : vector<8x8xf32>
      %78 = tpu.matmul %77, %44, %cst_38 {dimension_numbers = #tpu.dot_dimension_numbers<[1], [0], [0], [1], [0, 0, 1, 1], [], []>} : vector<8x8xbf16>, vector<8x8xbf16>, vector<8x8xf32> -> vector<8x8xf32>
      %c0_39 = arith.constant 0 : index
      %c0_40 = arith.constant 0 : index
      %79 = vector.load %arg11[%c0_39, %c0_40] : memref<8x1xf32, #tpu.memory_space<vmem>>, vector<8x1xf32>
      %80 = arith.mulf %78, %78 : vector<8x8xf32>
      %cst_41 = arith.constant dense<0.000000e+00> : vector<8xf32>
      %81 = vector.multi_reduction <add>, %80, %cst_41 [1] : vector<8x8xf32> to vector<8xf32>
      %82 = vector.shape_cast %81 : vector<8xf32> to vector<8x1xf32>
      %83 = arith.addf %79, %82 : vector<8x1xf32>
      %c0_42 = arith.constant 0 : index
      %c0_43 = arith.constant 0 : index
      %84 = vector.load %arg11[%c0_42, %c0_43] : memref<8x1xf32, #tpu.memory_space<vmem>>, vector<8x1xf32>
      tpu.vector_store %arg11[%c0_42, %c0_43], %83 {strides = array<i32>} : memref<8x1xf32, #tpu.memory_space<vmem>>, vector<8x1xf32>,
      %85 = arith.truncf %78 : vector<8x8xf32> to vector<8x8xbf16>
      %86 = arith.index_cast %arg12 : i32 to index
      %c0_44 = arith.constant 0 : index
      %c0_45 = arith.constant 0 : index
      %87 = vector.load %arg10[%86, %c0_44, %c0_45] : memref<4x8x8xbf16, #tpu.memory_space<vmem>>, vector<1x8x8xbf16>
      %88 = vector.shape_cast %87 : vector<1x8x8xbf16> to vector<8x8xbf16>
      %89 = vector.shape_cast %85 : vector<8x8xbf16> to vector<1x8x8xbf16>
      tpu.vector_store %arg10[%86, %c0_44, %c0_45], %89 {strides = array<i32>} : memref<4x8x8xbf16, #tpu.memory_space<vmem>>, vector<1x8x8xbf16>,
    }
    %c4_i32_6 = arith.constant 4 : i32
    %c0_7 = arith.constant 0 : index
    %c0_8 = arith.constant 0 : index
    %c0_9 = arith.constant 0 : index
    %9 = vector.load %arg10[%c0_7, %c0_8, %c0_9] : memref<4x8x8xbf16, #tpu.memory_space<vmem>>, vector<1x8x8xbf16>
    %10 = vector.shape_cast %9 : vector<1x8x8xbf16> to vector<8x8xbf16>
    %c1 = arith.constant 1 : index
    %c0_10 = arith.constant 0 : index
    %c0_11 = arith.constant 0 : index
    %11 = vector.load %arg10[%c1, %c0_10, %c0_11] : memref<4x8x8xbf16, #tpu.memory_space<vmem>>, vector<1x8x8xbf16>
    %12 = vector.shape_cast %11 : vector<1x8x8xbf16> to vector<8x8xbf16>
    %c2 = arith.constant 2 : index
    %c0_12 = arith.constant 0 : index
    %c0_13 = arith.constant 0 : index
    %13 = vector.load %arg10[%c2, %c0_12, %c0_13] : memref<4x8x8xbf16, #tpu.memory_space<vmem>>, vector<1x8x8xbf16>
    %14 = vector.shape_cast %13 : vector<1x8x8xbf16> to vector<8x8xbf16>
    %c3 = arith.constant 3 : index
    %c0_14 = arith.constant 0 : index
    %c0_15 = arith.constant 0 : index
    %15 = vector.load %arg10[%c3, %c0_14, %c0_15] : memref<4x8x8xbf16, #tpu.memory_space<vmem>>, vector<1x8x8xbf16>
    %16 = vector.shape_cast %15 : vector<1x8x8xbf16> to vector<8x8xbf16>
    %17 = tpu.concatenate %10, %12, %14, %16 in 1 : vector<8x8xbf16>, vector<8x8xbf16>, vector<8x8xbf16>, vector<8x8xbf16> -> vector<8x32xbf16>
    %c0_16 = arith.constant 0 : index
    %c0_17 = arith.constant 0 : index
    %18 = vector.load %arg6[%c0_16, %c0_17] : memref<32x32xbf16, #tpu.memory_space<vmem>>, vector<32x32xbf16>
    %cst_18 = arith.constant dense<0.000000e+00> : vector<8x32xf32>
    %19 = tpu.matmul %17, %18, %cst_18 {dimension_numbers = #tpu.dot_dimension_numbers<[1], [0], [0], [1], [0, 0, 1, 1], [], []>} : vector<8x32xbf16>, vector<32x32xbf16>, vector<8x32xf32> -> vector<8x32xf32>
    %c0_19 = arith.constant 0 : index
    %c0_20 = arith.constant 0 : index
    %20 = vector.load %arg11[%c0_19, %c0_20] : memref<8x1xf32, #tpu.memory_space<vmem>>, vector<8x1xf32>
    %cst_21 = arith.constant 3.125000e-02 : f32
    %21 = vector.broadcast %cst_21 : f32 to vector<8x1xf32>
    %22 = arith.mulf %20, %21 : vector<8x1xf32>
    %cst_22 = arith.constant 9.99999997E-7 : f32
    %23 = vector.broadcast %cst_22 : f32 to vector<8x1xf32>
    %24 = arith.addf %22, %23 : vector<8x1xf32>
    %25 = math.rsqrt %24 : vector<8x1xf32>
    %26 = vector.broadcast %25 : vector<8x1xf32> to vector<8x32xf32>
    %27 = arith.mulf %19, %26 : vector<8x32xf32>
    %c0_23 = arith.constant 0 : index
    %c0_24 = arith.constant 0 : index
    %c0_25 = arith.constant 0 : index
    %28 = vector.load %arg8[%c0_23, %c0_24, %c0_25] : memref<1x8x32xf32, #tpu.memory_space<vmem>>, vector<1x8x32xf32>
    %29 = vector.shape_cast %28 : vector<1x8x32xf32> to vector<8x32xf32>
    %30 = vector.shape_cast %27 : vector<8x32xf32> to vector<1x8x32xf32>
    tpu.vector_store %arg8[%c0_23, %c0_24, %c0_25], %30 {strides = array<i32>} : memref<1x8x32xf32, #tpu.memory_space<vmem>>, vector<1x8x32xf32>,
    return
  }
  func.func @transform_0(%arg0: i32, %arg1: i32) -> (i32, i32, i32) {
    %c0_i32 = arith.constant 0 : i32
    %c0_i32_0 = arith.constant 0 : i32
    return %arg0, %arg1, %c0_i32 : i32, i32, i32
  }
  func.func @transform_1(%arg0: i32, %arg1: i32) -> (i32, i32, i32) {
    %c0_i32 = arith.constant 0 : i32
    %c0_i32_0 = arith.constant 0 : i32
    %c0_i32_1 = arith.constant 0 : i32
    return %arg0, %c0_i32, %c0_i32_0 : i32, i32, i32
  }
  func.func @transform_2(%arg0: i32, %arg1: i32) -> (i32, i32, i32) {
    %c0_i32 = arith.constant 0 : i32
    %c0_i32_0 = arith.constant 0 : i32
    %c0_i32_1 = arith.constant 0 : i32
    %c0_i32_2 = arith.constant 0 : i32
    return %c0_i32, %c0_i32_0, %c0_i32_1 : i32, i32, i32
  }
  func.func @transform_3(%arg0: i32, %arg1: i32) -> (i32, i32, i32) {
    %c0_i32 = arith.constant 0 : i32
    %c0_i32_0 = arith.constant 0 : i32
    %c0_i32_1 = arith.constant 0 : i32
    %c0_i32_2 = arith.constant 0 : i32
    return %c0_i32, %c0_i32_0, %c0_i32_1 : i32, i32, i32
  }
  func.func @transform_4(%arg0: i32, %arg1: i32) -> (i32, i32) {
    %c0_i32 = arith.constant 0 : i32
    %c0_i32_0 = arith.constant 0 : i32
    %c0_i32_1 = arith.constant 0 : i32
    return %c0_i32, %c0_i32_0 : i32, i32
  }
  func.func @transform_5(%arg0: i32, %arg1: i32) -> i32 {
    %c0_i32 = arith.constant 0 : i32
    %c0_i32_0 = arith.constant 0 : i32
    return %c0_i32 : i32
  }
  func.func @transform_6(%arg0: i32, %arg1: i32) -> (i32, i32, i32) {
    %c0_i32 = arith.constant 0 : i32
    %c0_i32_0 = arith.constant 0 : i32
    return %arg0, %arg1, %c0_i32 : i32, i32, i32
  }
}

</mosaic_0001>

<llo_original>
// kernel: differential_attention.1
$region0: #{differential_attention.1}
  #allocation0 [shape = 'u32[]', space=smem, size = 0x4, offset = 0x4, fixed_abs, tag = 'smem constant byte address 0x4 - core index']
  #allocation1 [shape = 'u32[144,128]{1,0:T(1,128)}', space=vmem, size = 0x12000, scoped, tag = 'internal scratch']
  #allocation2 [shape = 'bf16[4,8,24]{2,1,0:T(8,128)(2,1)}', space=vmem, size = 0x2000, scoped, tag = 'scratch operand']
  #allocation3 [shape = 'bf16[4,8,8]{2,1,0:T(8,128)(2,1)}', space=vmem, size = 0x2000, scoped, tag = 'scratch operand']
  #allocation4 [shape = 'f32[8,1]{1,0:T(8,128)}', space=vmem, size = 0x1000, scoped, tag = 'scratch operand']
  %s0 = inlined_call_operand.vmem [shape: f32[2,8,32], index: 0, kind: input, shape index: {}, may-alias: {0,1}]
  %s1 = inlined_call_operand.vmem [shape: f32[2,8,32], index: 1, kind: input, shape index: {}, may-alias: {0,1}]
  %s2 = inlined_call_operand.vmem [shape: bf16[4,32,16], index: 2, kind: input, shape index: {}]
  %s3 = inlined_call_operand.vmem [shape: bf16[4,32,24], index: 3, kind: input, shape index: {}]
  %s4 = inlined_call_operand.vmem [shape: bf16[32,32], index: 4, kind: input, shape index: {}]
  %s5 = inlined_call_operand.vmem [shape: f32[4], index: 5, kind: input, shape index: {}]
  %s6 = inlined_call_operand.hbm [shape: f32[2,8,32], index: 6, kind: output, shape index: {}]
  %s7 = sld [smem:[#allocation0]]
  $region79: #{differential_attention.1} parent=0
    _
  %s9 = ssub.s32 1, %s7
  %s10 = scalar_select 0, %s9, %s7
  $region1: #{differential_attention.1} parent=0
    #allocation5 [shape = 'u8[512]{0}', space=smem, size = 0x200, scoped, tag = 'input window, operand 5, single buffered']
    #allocation6 [shape = 's32[2]{0}', space=sflag, size = 0x8, scoped, tag = 'scoped memory for differential_attention.1']
    #allocation7 [shape = 's32[2]{0}', space=sflag, size = 0x8, scoped, tag = 'scoped memory for differential_attention.1']
    #allocation8 [shape = 'u8[8192]{0}', space=vmem, size = 0x2000, scoped, tag = 'output window, operand 0']
    %11 = vsyncpa [#allocation7], 0
    %12 = vsyncpa [#allocation6], 0
    %s13 = scalar_lea.sflag [#allocation6], 1
    %14 = vsyncpa %s13, 0
    loop: start=0, step=1, limit=4
    $region2: #{differential_attention.1} parent=1 // loop_pre_header
      _
    $region3: #{differential_attention.1} parent=1 // loop_header
      %s16 = sphi 0, %s20
      %p17 = scmp.ge.s32.totalorder %s16, 4
      %s23 = sphi 0, %s35
      %s24 = sphi 0, %s31
      %s25 = sphi 0, %s23
      %s26 = sphi 0, %s24
      %s27 = sphi 0, %s25
      %s28 = sphi 0, %s26
      %s40 = sphi 0, %s42
      %s43 = sphi 0, %s40
      %s44 = sphi 0, %s43
      %s60 = sphi 0, %s44
      %s66 = sphi 0, %s68
      %s69 = sphi 0, %s66
      %s70 = sphi 0, %s69
      %s86 = sphi 0, %s70
      %s90 = sphi 0, %s90
      %s92 = sphi 0, %s90
      %s93 = sphi 0, %s92
      %s107 = sphi 0, %s93
      %s111 = sphi 0, %s111
      %s113 = sphi 0, %s111
      %s114 = sphi 0, %s113
      %s128 = sphi 0, %s114
      %s132 = sphi 0, %s132
      %s134 = sphi 0, %s132
      %s135 = sphi 0, %s134
      %s149 = sphi 0, %s135
      %s153 = sphi 0, %s153
      %s155 = sphi 0, %s153
      %s156 = sphi 0, %s155
      %s170 = sphi 0, %s156
      %s178 = sphi 0, %s180
      %s181 = sphi 0, %s178
      %s182 = sphi 0, %s181
      %s198 = sphi 0, %s182
    $region4: #{differential_attention.1} parent=1 // loop_header_branch
      %19 = sbr.rel (%p17) target = $region8
    $region5: #{differential_attention.1} parent=1 // loop_body
      %s21 = ssub.s32 %s16, 1
      %s22 = ssub.s32 %s16, 2
      %s29 = sadd.s32 1, %s24
      %p30 = scmp.ge.s32.totalorder %s29, 1
      %s31 = scalar_select %p30, 0, %s29
      %s32 = sadd.s32 1, %s23
      %s33 = scalar_select %p30, %s32, %s23
      %p34 = scmp.ge.s32.totalorder %s33, 2
      %s35 = scalar_select %p34, 0, %s33
      %s36 = ssub.s32 %s23, %s35
      %s37 = ssub.s32 %s24, %s31
      %s38 = sor.u32 %s36, %s37
      %p39 = scmp.eq.s32.totalorder %s38, 0
      %s41 = sadd.s32 %s40, 1
      %s42 = scalar_select %p39, %s40, %s41
      %p45 = pneg %p39
      %p46 = scmp.eq.s32.totalorder %s16, 1
      %p47 = por %p45, %p46
      %p48 = scmp.ne.s32.totalorder %s40, %s43
      %p49 = scmp.eq.s32.totalorder %s16, 0
      %p50 = por %p48, %p49
      %p51 = scmp.ne.s32.totalorder %s40, %s43
      %p52 = scmp.eq.s32.totalorder %s21, 1
      %p53 = por %p51, %p52
      %p54 = scmp.ne.s32.totalorder %s43, %s44
      %p55 = scmp.eq.s32.totalorder %s21, 0
      %p56 = por %p54, %p55
      %p57 = scmp.ne.s32.totalorder %s43, %s44
      %p58 = scmp.eq.s32.totalorder %s22, 1
      %p59 = por %p57, %p58
      %p61 = scmp.ne.s32.totalorder %s44, %s60
      %p62 = scmp.eq.s32.totalorder %s22, 0
      %p63 = por %p61, %p62
      %s64 = ssub.s32 %s23, %s35
      %p65 = scmp.eq.s32.totalorder %s64, 0
      %s67 = sadd.s32 %s66, 1
      %s68 = scalar_select %p65, %s66, %s67
      %p71 = pneg %p65
      %p72 = scmp.eq.s32.totalorder %s16, 1
      %p73 = por %p71, %p72
      %p74 = scmp.ne.s32.totalorder %s66, %s69
      %p75 = scmp.eq.s32.totalorder %s16, 0
      %p76 = por %p74, %p75
      %p77 = scmp.ne.s32.totalorder %s66, %s69
      %p78 = scmp.eq.s32.totalorder %s21, 1
      %p79 = por %p77, %p78
      %p80 = scmp.ne.s32.totalorder %s69, %s70
      %p81 = scmp.eq.s32.totalorder %s21, 0
      %p82 = por %p80, %p81
      %p83 = scmp.ne.s32.totalorder %s69, %s70
      %p84 = scmp.eq.s32.totalorder %s22, 1
      %p85 = por %p83, %p84
      %p87 = scmp.ne.s32.totalorder %s70, %s86
      %p88 = scmp.eq.s32.totalorder %s22, 0
      %p89 = por %p87, %p88
      %s91 = sadd.s32 %s90, 1
      %p94 = scmp.eq.s32.totalorder %s16, 1
      %p95 = scmp.ne.s32.totalorder %s90, %s92
      %p96 = scmp.eq.s32.totalorder %s16, 0
      %p97 = por %p95, %p96
      %p98 = scmp.ne.s32.totalorder %s90, %s92
      %p99 = scmp.eq.s32.totalorder %s21, 1
      %p100 = por %p98, %p99
      %p101 = scmp.ne.s32.totalorder %s92, %s93
      %p102 = scmp.eq.s32.totalorder %s21, 0
      %p103 = por %p101, %p102
      %p104 = scmp.ne.s32.totalorder %s92, %s93
      %p105 = scmp.eq.s32.totalorder %s22, 1
      %p106 = por %p104, %p105
      %p108 = scmp.ne.s32.totalorder %s93, %s107
      %p109 = scmp.eq.s32.totalorder %s22, 0
      %p110 = por %p108, %p109
      %s112 = sadd.s32 %s111, 1
      %p115 = scmp.eq.s32.totalorder %s16, 1
      %p116 = scmp.ne.s32.totalorder %s111, %s113
      %p117 = scmp.eq.s32.totalorder %s16, 0
      %p118 = por %p116, %p117
      %p119 = scmp.ne.s32.totalorder %s111, %s113
      %p120 = scmp.eq.s32.totalorder %s21, 1
      %p121 = por %p119, %p120
      %p122 = scmp.ne.s32.totalorder %s113, %s114
      %p123 = scmp.eq.s32.totalorder %s21, 0
      %p124 = por %p122, %p123
      %p125 = scmp.ne.s32.totalorder %s113, %s114
      %p126 = scmp.eq.s32.totalorder %s22, 1
      %p127 = por %p125, %p126
      %p129 = scmp.ne.s32.totalorder %s114, %s128
      %p130 = scmp.eq.s32.totalorder %s22, 0
      %p131 = por %p129, %p130
      %s133 = sadd.s32 %s132, 1
      %p136 = scmp.eq.s32.totalorder %s16, 1
      %p137 = scmp.ne.s32.totalorder %s132, %s134
      %p138 = scmp.eq.s32.totalorder %s16, 0
      %p139 = por %p137, %p138
      %p140 = scmp.ne.s32.totalorder %s132, %s134
      %p141 = scmp.eq.s32.totalorder %s21, 1
      %p142 = por %p140, %p141
      %p143 = scmp.ne.s32.totalorder %s134, %s135
      %p144 = scmp.eq.s32.totalorder %s21, 0
      %p145 = por %p143, %p144
      %p146 = scmp.ne.s32.totalorder %s134, %s135
      %p147 = scmp.eq.s32.totalorder %s22, 1
      %p148 = por %p146, %p147
      %p150 = scmp.ne.s32.totalorder %s135, %s149
      %p151 = scmp.eq.s32.totalorder %s22, 0
      %p152 = por %p150, %p151
      %s154 = sadd.s32 %s153, 1
      %p157 = scmp.eq.s32.totalorder %s16, 1
      %p158 = scmp.ne.s32.totalorder %s153, %s155
      %p159 = scmp.eq.s32.totalorder %s16, 0
      %p160 = por %p158, %p159
      %p161 = scmp.ne.s32.totalorder %s153, %s155
      %p162 = scmp.eq.s32.totalorder %s21, 1
      %p163 = por %p161, %p162
      %p164 = scmp.ne.s32.totalorder %s155, %s156
      %p165 = scmp.eq.s32.totalorder %s21, 0
      %p166 = por %p164, %p165
      %p167 = scmp.ne.s32.totalorder %s155, %s156
      %p168 = scmp.eq.s32.totalorder %s22, 1
      %p169 = por %p167, %p168
      %p171 = scmp.ne.s32.totalorder %s156, %s170
      %p172 = scmp.eq.s32.totalorder %s22, 0
      %p173 = por %p171, %p172
      %s174 = ssub.s32 %s23, %s35
      %s175 = ssub.s32 %s24, %s31
      %s176 = sor.u32 %s174, %s175
      %p177 = scmp.eq.s32.totalorder %s176, 0
      %s179 = sadd.s32 %s178, 1
      %s180 = scalar_select %p177, %s178, %s179
      %p183 = pneg %p177
      %p184 = scmp.eq.s32.totalorder %s16, 1
      %p185 = por %p183, %p184
      %p186 = scmp.ne.s32.totalorder %s178, %s181
      %p187 = scmp.eq.s32.totalorder %s16, 0
      %p188 = por %p186, %p187
      %p189 = scmp.ne.s32.totalorder %s178, %s181
      %p190 = scmp.eq.s32.totalorder %s21, 1
      %p191 = por %p189, %p190
      %p192 = scmp.ne.s32.totalorder %s181, %s182
      %p193 = scmp.eq.s32.totalorder %s21, 0
      %p194 = por %p192, %p193
      %p195 = scmp.ne.s32.totalorder %s181, %s182
      %p196 = scmp.eq.s32.totalorder %s22, 1
      %p197 = por %p195, %p196
      %p199 = scmp.ne.s32.totalorder %s182, %s198
      %p200 = scmp.eq.s32.totalorder %s22, 0
      %p201 = por %p199, %p200
      %p202 = scmp.le.s32.totalorder 1, %s16
      %p203 = scmp.lt.s32.totalorder %s16, 3
      %p204 = pnand %p202, %p203
      %p205 = pneg %p204
      // Predicated region
      $region9: #{differential_attention.1} parent=5 // pred_check
        _
      $region10: #{differential_attention.1} parent=5 // pred_check_branch
        %207 = sbr.rel (%p204) target = $region12
      $region11: #{differential_attention.1} parent=5 // pred_region
        %s208 = ssub.s32 %s16, 1
        // Predicated region
        $region13: #{differential_attention.1} parent=11 // pred_check
          %p209 = pneg %p103
        $region14: #{differential_attention.1} parent=11 // pred_check_branch
          %211 = sbr.rel (%p209) target = $region16
        $region15: #{differential_attention.1} parent=11 // pred_region
          _
        $region16: #{differential_attention.1} parent=11 // pred_fallthru
          _
        // Predicated region
        $region17: #{differential_attention.1} parent=11 // pred_check
          %p212 = pneg %p124
        $region18: #{differential_attention.1} parent=11 // pred_check_branch
          %214 = sbr.rel (%p212) target = $region20
        $region19: #{differential_attention.1} parent=11 // pred_region
          _
        $region20: #{differential_attention.1} parent=11 // pred_fallthru
          _
        // Predicated region
        $region21: #{differential_attention.1} parent=11 // pred_check
          %p215 = pneg %p145
        $region22: #{differential_attention.1} parent=11 // pred_check_branch
          %217 = sbr.rel (%p215) target = $region24
        $region23: #{differential_attention.1} parent=11 // pred_region
          _
        $region24: #{differential_attention.1} parent=11 // pred_fallthru
          _
        // Predicated region
        $region25: #{differential_attention.1} parent=11 // pred_check
          %p218 = pneg %p166
        $region26: #{differential_attention.1} parent=11 // pred_check_branch
          %220 = sbr.rel (%p218) target = $region28
        $region27: #{differential_attention.1} parent=11 // pred_region
          %s222 = ssub.s32 16, 16
          %223 = vsyncadd [#allocation7], %s222
          %s225 = sshll.u32 %s5, 4
          %s226 = int_to_ptr.vmem [resolvable:$true] %s225
          %228 = dma.vmem_to_smem %s226, 16, [#allocation5], [#allocation7]
        $region28: #{differential_attention.1} parent=11 // pred_fallthru
          _
      $region12: #{differential_attention.1} parent=5 // pred_fallthru
        _
      %p229 = scmp.lt.s32.totalorder %s16, 2
      // Predicated region
      $region29: #{differential_attention.1} parent=5 // pred_check
        %p230 = pneg %p229
      $region30: #{differential_attention.1} parent=5 // pred_check_branch
        %232 = sbr.rel (%p230) target = $region32
      $region31: #{differential_attention.1} parent=5 // pred_region
        // Predicated region
        $region33: #{differential_attention.1} parent=31 // pred_check
          %p233 = pneg %p50
        $region34: #{differential_attention.1} parent=31 // pred_check_branch
          %235 = sbr.rel (%p233) target = $region36
        $region35: #{differential_attention.1} parent=31 // pred_region
          %p236 = scmp.lt.s32.totalorder %s23, 1
          %s237 = scalar_select %p236, %s23, 1
          %p238 = scmp.lt.s32.totalorder %s24, 0
          %s239 = scalar_select %p238, %s24, 0
          %s240 = sadd.s32 %s239, %s237
          %s241 = smul.addr %s240, 8
          %s242 = scalar_lea.vmem %s0, %s241
        $region36: #{differential_attention.1} parent=31 // pred_fallthru
          _
        // Predicated region
        $region37: #{differential_attention.1} parent=31 // pred_check
          %p243 = pneg %p76
        $region38: #{differential_attention.1} parent=31 // pred_check_branch
          %245 = sbr.rel (%p243) target = $region40
        $region39: #{differential_attention.1} parent=31 // pred_region
          %p246 = scmp.lt.s32.totalorder %s23, 1
          %s247 = scalar_select %p246, %s23, 1
          %s248 = smul.addr %s247, 8
          %s249 = scalar_lea.vmem %s1, %s248
        $region40: #{differential_attention.1} parent=31 // pred_fallthru
          _
      $region32: #{differential_attention.1} parent=5 // pred_fallthru
        _
      %p250 = scmp.le.s32.totalorder 1, %s16
      %p251 = scmp.lt.s32.totalorder %s16, 3
      %p252 = pnand %p250, %p251
      %p253 = pneg %p252
      // Predicated region
      $region41: #{differential_attention.1} parent=5 // pred_check
        _
      $region42: #{differential_attention.1} parent=5 // pred_check_branch
        %255 = sbr.rel (%p252) target = $region44
      $region43: #{differential_attention.1} parent=5 // pred_region
        %s256 = ssub.s32 %s16, 1
        // Predicated region
        $region45: #{differential_attention.1} parent=43 // pred_check
          %p257 = pneg %p166
        $region46: #{differential_attention.1} parent=43 // pred_check_branch
          %259 = sbr.rel (%p257) target = $region48
        $region47: #{differential_attention.1} parent=43 // pred_region
          %260 = dma.done [#allocation7], 16
        $region48: #{differential_attention.1} parent=43 // pred_fallthru
          _
        %261 = sfence
        %p262 = scmp.lt.s32.totalorder %s25, 1
        %s263 = scalar_select %p262, %s25, 1
        %p264 = scmp.lt.s32.totalorder %s26, 0
        %s265 = scalar_select %p264, %s26, 0
        %s266 = sadd.s32 %s265, %s263
        %s267 = smul.addr %s266, 8
        %s268 = scalar_lea.vmem %s0, %s267
        %p269 = pneg %p56
        %p270 = pneg %p53
        %p271 = scmp.lt.s32.totalorder %s25, 1
        %s272 = scalar_select %p271, %s25, 1
        %s273 = smul.addr %s272, 8
        %s274 = scalar_lea.vmem %s1, %s273
        %p275 = pneg %p82
        %p276 = pneg %p79
        %p277 = pneg %p103
        %p278 = pneg %p100
        %p279 = pneg %p124
        %p280 = pneg %p121
        %p281 = pneg %p145
        %p282 = pneg %p142
        %p283 = pneg %p166
        %p284 = pneg %p163
        %p285 = pneg %p194
        %p286 = pneg %p191
        %s287 = sand.u32 %s181, 1
        %s288 = scalar_lea.sflag [#allocation6], %s287
        %s289 = sand.u32 %s181, 1
        %s290 = smul.addr %s289, 8
        %s291 = scalar_lea.vmem [#allocation8], %s290
        %p292 = scmp.lt.s32.totalorder %s25, 1
        %s293 = scalar_select %p292, %s25, 1
        %p294 = scmp.lt.s32.totalorder %s26, 0
        %s295 = scalar_select %p294, %s26, 0
        %s296 = sadd.s32 %s295, %s293
        %s297 = smul.addr %s296, 8
        %s298 = scalar_lea.vmem %s0, %s297
        %p299 = scmp.lt.s32.totalorder %s25, 1
        %s300 = scalar_select %p299, %s25, 1
        %s301 = smul.addr %s300, 8
        %s302 = scalar_lea.vmem %s1, %s301
        %p304 = scmp.eq.s32.totalorder %s26, 0
        // Predicated region
        $region49: #{differential_attention.1} parent=43 // pred_check
          %p305 = pneg %p304
        $region50: #{differential_attention.1} parent=43 // pred_check_branch
          %307 = sbr.rel (%p305) target = $region52
        $region51: #{differential_attention.1} parent=43 // pred_region
          %v308 = vld [vmem:[%s302] sm:$0xff]
          %v309 = vpack.c.bf16 %v308, %v308
          loop: start=0, step=1, limit=4
          $region53: #{differential_attention.1} parent=51 // loop_pre_header
            _
          $region54: #{differential_attention.1} parent=51 // loop_header
            %s311 = sphi 0, %s315
            %p312 = scmp.ge.s32.totalorder %s311, 4
          $region55: #{differential_attention.1} parent=51 // loop_header_branch
            %314 = sbr.rel (%p312) target = $region59
          $region56: #{differential_attention.1} parent=51 // loop_body
            %s316 = smul.u32 %s311, 4
            %s317 = smul.addr %s316, 4
            %s318 = scalar_lea.vmem %s3, %s317
            %v319 = vld [vmem:[%s318] sm:$0xf]
            %v320 = vld [vmem:[%s318 + $0x4] sm:$0xf]
            %v321 = vld [vmem:[%s318 + $0x8] sm:$0xf]
            %v322 = vld [vmem:[%s318 + $0xc] sm:$0xf]
            %v327 = vunpack.c.l.b16 %v319
            %v328 = vunpack.c.l.b16 %v320
            %v329 = vunpack.c.l.b16 %v321
            %v330 = vunpack.c.l.b16 %v322
            %v331 = vpack.c.b16 %v328, %v327
            %v332 = vpack.c.b16 %v330, %v329
            %vm335 = vcmask 261120
            %v337 = vsel %vm335, %v309, 0
            %339 = vmatprep.subr.bf16.mxu0 0
            %340 = vmatpush1.bf16.msra.mxu0 %v331
            %341 = vmatprep.subr.bf16.mxu0 0
            %342 = vmatpush1.bf16.msra.mxu0 %v332
            %343 = vmatprep.subr.bf16.mxu0 0
            %344 = vmatpush1.bf16.msra.mxu0 0
            %345 = vmatprep.subr.bf16.mxu0 0
            %346 = vmatpush1.bf16.msra.mxu0 0
            %347 = vmatprep.subr.bf16.mxu0 0
            %348 = vmatpush1.bf16.msra.mxu0 0
            %349 = vmatprep.subr.bf16.mxu0 0
            %350 = vmatpush1.bf16.msra.mxu0 0
            %351 = vmatprep.subr.bf16.mxu0 0
            %352 = vmatpush1.bf16.msra.mxu0 0
            %353 = vmatprep.subr.bf16.mxu0 0
            %354 = vmatpush1.bf16.msra.mxu0 0
            %355 = vmatprep.subr.bf16.mxu0 0
            %356 = vmatpush1.bf16.msra.mxu0 0
            %357 = vmatprep.subr.bf16.mxu0 0
            %358 = vmatpush1.bf16.msra.mxu0 0
            %359 = vmatprep.subr.bf16.mxu0 0
            %360 = vmatpush1.bf16.msra.mxu0 0
            %361 = vmatprep.subr.bf16.mxu0 0
            %362 = vmatpush1.bf16.msra.mxu0 0
            %363 = vmatprep.subr.bf16.mxu0 0
            %364 = vmatpush1.bf16.msra.mxu0 0
            %365 = vmatprep.subr.bf16.mxu0 0
            %366 = vmatpush1.bf16.msra.mxu0 0
            %367 = vmatprep.subr.bf16.mxu0 0
            %368 = vmatpush1.bf16.msra.mxu0 0
            %369 = vmatprep.subr.bf16.mxu0 0
            %370 = vmatpush1.bf16.msra.mxu0 0
            %371 = vmatprep.mubr.bf16.mxu0 0
            %372 = vmatmul.mubr.bf16.gmra.mrb[0].mxu0 %v337
            %v373 = vpop.f32.mrb[0].mxu0
            %v374 = vadd.f32 0.0, %v373
            %v375 = vpop.f32.mrb[0].mxu0
            %v376 = vpop.f32.mrb[0].mxu0
            %v377 = vpop.f32.mrb[0].mxu0
            %378 = vdwg.mxu0
            %v379 = vpack.c.bf16 %v374, %v374
            %s380 = smul.addr %s311, 4
            %s381 = scalar_lea.vmem [#allocation2], %s380
            %vm382 = vcmask 191488
            %383 = vst.msk [vmem:[%s381] sm:$0xf] %vm382, %v379
          $region57: #{differential_attention.1} parent=51 // loop_footer
            %s315 = sadd.s32 1, %s311
          $region58: #{differential_attention.1} parent=51 // loop_footer_branch
            %310 = sbr.rel target = $region54
          $region59: #{differential_attention.1} parent=51 // loop_exit
            _
        $region52: #{differential_attention.1} parent=43 // pred_fallthru
          _
        %v384 = vld [vmem:[%s298] sm:$0xff]
        %v385 = vpack.c.bf16 %v384, %v384
        %vm386 = vcmask 7168
        %387 = vst.msk [vmem:[#allocation4] sm:$0xff] %vm386, 0.0
        loop: start=0, step=1, limit=4
        $region60: #{differential_attention.1} parent=43 // loop_pre_header
          _
        $region61: #{differential_attention.1} parent=43 // loop_header
          %s389 = sphi 0, %s393
          %p390 = scmp.ge.s32.totalorder %s389, 4
        $region62: #{differential_attention.1} parent=43 // loop_header_branch
          %392 = sbr.rel (%p390) target = $region66
        $region63: #{differential_attention.1} parent=43 // loop_body
          %s394 = smul.u32 %s389, 4
          %s395 = smul.addr %s394, 4
          %s396 = scalar_lea.vmem %s2, %s395
          %v397 = vld [vmem:[%s396] sm:$0xf]
          %v398 = vld [vmem:[%s396 + $0x4] sm:$0xf]
          %v399 = vld [vmem:[%s396 + $0x8] sm:$0xf]
          %v400 = vld [vmem:[%s396 + $0xc] sm:$0xf]
          %v405 = vunpack.c.l.b16 %v397
          %v406 = vunpack.c.l.b16 %v398
          %v407 = vunpack.c.l.b16 %v399
          %v408 = vunpack.c.l.b16 %v400
          %v409 = vpack.c.b16 %v406, %v405
          %v410 = vpack.c.b16 %v408, %v407
          %vm413 = vcmask 261120
          %v415 = vsel %vm413, %v385, 0
          %417 = vmatprep.subr.bf16.mxu0 0
          %418 = vmatpush1.bf16.msra.mxu0 %v409
          %419 = vmatprep.subr.bf16.mxu0 0
          %420 = vmatpush1.bf16.msra.mxu0 %v410
          %421 = vmatprep.subr.bf16.mxu0 0
          %422 = vmatpush1.bf16.msra.mxu0 0
          %423 = vmatprep.subr.bf16.mxu0 0
          %424 = vmatpush1.bf16.msra.mxu0 0
          %425 = vmatprep.subr.bf16.mxu0 0
          %426 = vmatpush1.bf16.msra.mxu0 0
          %427 = vmatprep.subr.bf16.mxu0 0
          %428 = vmatpush1.bf16.msra.mxu0 0
          %429 = vmatprep.subr.bf16.mxu0 0
          %430 = vmatpush1.bf16.msra.mxu0 0
          %431 = vmatprep.subr.bf16.mxu0 0
          %432 = vmatpush1.bf16.msra.mxu0 0
          %433 = vmatprep.subr.bf16.mxu0 0
          %434 = vmatpush1.bf16.msra.mxu0 0
          %435 = vmatprep.subr.bf16.mxu0 0
          %436 = vmatpush1.bf16.msra.mxu0 0
          %437 = vmatprep.subr.bf16.mxu0 0
          %438 = vmatpush1.bf16.msra.mxu0 0
          %439 = vmatprep.subr.bf16.mxu0 0
          %440 = vmatpush1.bf16.msra.mxu0 0
          %441 = vmatprep.subr.bf16.mxu0 0
          %442 = vmatpush1.bf16.msra.mxu0 0
          %443 = vmatprep.subr.bf16.mxu0 0
          %444 = vmatpush1.bf16.msra.mxu0 0
          %445 = vmatprep.subr.bf16.mxu0 0
          %446 = vmatpush1.bf16.msra.mxu0 0
          %447 = vmatprep.subr.bf16.mxu0 0
          %448 = vmatpush1.bf16.msra.mxu0 0
          %449 = vmatprep.mubr.bf16.mxu0 0
          %450 = vmatmul.mubr.bf16.gmra.mrb[0].mxu0 %v415
          %v451 = vpop.f32.mrb[0].mxu0
          %v452 = vadd.f32 0.0, %v451
          %v453 = vpop.f32.mrb[0].mxu0
          %v454 = vpop.f32.mrb[0].mxu0
          %v455 = vpop.f32.mrb[0].mxu0
          %456 = vdwg.mxu0
          %v457 = vpack.c.bf16 %v452, %v452
          %s458 = smul.addr %s389, 4
          %s459 = scalar_lea.vmem [#allocation2], %s458
          %v460 = vld [vmem:[%s459] sm:$0xf]
          %vm461 = vcmask 64512
          %v463 = vsel %vm461, %v457, 0
          %v466 = vsel %vm461, %v460, 0
          %468 = vmatprep.subr.bf16.mxu0 0
          %469 = vmatpush1.bf16.xpose.msra.mxu0 %v466
          %470 = vmatprep.subr.bf16.mxu0 0
          %471 = vmatpush1.bf16.xpose.msra.mxu0 0
          %472 = vmatprep.subr.bf16.mxu0 0
          %473 = vmatpush1.bf16.xpose.msra.mxu0 0
          %474 = vmatprep.subr.bf16.mxu0 0
          %475 = vmatpush1.bf16.xpose.msra.mxu0 0
          %476 = vmatprep.subr.bf16.mxu0 0
          %477 = vmatpush1.bf16.xpose.msra.mxu0 0
          %478 = vmatprep.subr.bf16.mxu0 0
          %479 = vmatpush1.bf16.xpose.msra.mxu0 0
          %480 = vmatprep.subr.bf16.mxu0 0
          %481 = vmatpush1.bf16.xpose.msra.mxu0 0
          %482 = vmatprep.subr.bf16.mxu0 0
          %483 = vmatpush1.bf16.xpose.msra.mxu0 0
          %484 = vmatprep.subr.bf16.mxu0 0
          %485 = vmatpush1.bf16.xpose.msra.mxu0 0
          %486 = vmatprep.subr.bf16.mxu0 0
          %487 = vmatpush1.bf16.xpose.msra.mxu0 0
          %488 = vmatprep.subr.bf16.mxu0 0
          %489 = vmatpush1.bf16.xpose.msra.mxu0 0
          %490 = vmatprep.subr.bf16.mxu0 0
          %491 = vmatpush1.bf16.xpose.msra.mxu0 0
          %492 = vmatprep.subr.bf16.mxu0 0
          %493 = vmatpush1.bf16.xpose.msra.mxu0 0
          %494 = vmatprep.subr.bf16.mxu0 0
          %495 = vmatpush1.bf16.xpose.msra.mxu0 0
          %496 = vmatprep.subr.bf16.mxu0 0
          %497 = vmatpush1.bf16.xpose.msra.mxu0 0
          %498 = vmatprep.subr.bf16.mxu0 0
          %499 = vmatpush1.bf16.xpose.msra.mxu0 0
          %500 = vmatprep.mubr.bf16.mxu0 0
          %501 = vmatmul.mubr.bf16.gmra.mrb[0].mxu0 %v463
          %v502 = vpop.f32.mrb[0].mxu0
          %v503 = vadd.f32 0.0, %v502
          %v504 = vpop.f32.mrb[0].mxu0
          %v505 = vpop.f32.mrb[0].mxu0
          %v506 = vpop.f32.mrb[0].mxu0
          %507 = vdwg.mxu0
          %509 = vrot.lane.b32.xlu0 %v457, 120
          %v510 = vpop.permute.xlu0 %509
          %v512 = vunpack.c.l.b16 %v460
          %v513 = vpack.c.b16 %v512, %v512
          %514 = vrot.lane.b32.xlu0 %v513, 120
          %v515 = vpop.permute.xlu0 %514
          %v517 = vsel %vm461, %v510, 0
          %v520 = vsel %vm461, %v515, 0
          %522 = vmatprep.subr.bf16.mxu0 0
          %523 = vmatpush1.bf16.xpose.msra.mxu0 %v520
          %524 = vmatprep.subr.bf16.mxu0 0
          %525 = vmatpush1.bf16.xpose.msra.mxu0 0
          %526 = vmatprep.subr.bf16.mxu0 0
          %527 = vmatpush1.bf16.xpose.msra.mxu0 0
          %528 = vmatprep.subr.bf16.mxu0 0
          %529 = vmatpush1.bf16.xpose.msra.mxu0 0
          %530 = vmatprep.subr.bf16.mxu0 0
          %531 = vmatpush1.bf16.xpose.msra.mxu0 0
          %532 = vmatprep.subr.bf16.mxu0 0
          %533 = vmatpush1.bf16.xpose.msra.mxu0 0
          %534 = vmatprep.subr.bf16.mxu0 0
          %535 = vmatpush1.bf16.xpose.msra.mxu0 0
          %536 = vmatprep.subr.bf16.mxu0 0
          %537 = vmatpush1.bf16.xpose.msra.mxu0 0
          %538 = vmatprep.subr.bf16.mxu0 0
          %539 = vmatpush1.bf16.xpose.msra.mxu0 0
          %540 = vmatprep.subr.bf16.mxu0 0
          %541 = vmatpush1.bf16.xpose.msra.mxu0 0
          %542 = vmatprep.subr.bf16.mxu0 0
          %543 = vmatpush1.bf16.xpose.msra.mxu0 0
          %544 = vmatprep.subr.bf16.mxu0 0
          %545 = vmatpush1.bf16.xpose.msra.mxu0 0
          %546 = vmatprep.subr.bf16.mxu0 0
          %547 = vmatpush1.bf16.xpose.msra.mxu0 0
          %548 = vmatprep.subr.bf16.mxu0 0
          %549 = vmatpush1.bf16.xpose.msra.mxu0 0
          %550 = vmatprep.subr.bf16.mxu0 0
          %551 = vmatpush1.bf16.xpose.msra.mxu0 0
          %552 = vmatprep.subr.bf16.mxu0 0
          %553 = vmatpush1.bf16.xpose.msra.mxu0 0
          %554 = vmatprep.mubr.bf16.mxu0 0
          %555 = vmatmul.mubr.bf16.gmra.mrb[0].mxu0 %v517
          %v556 = vpop.f32.mrb[0].mxu0
          %v557 = vadd.f32 0.0, %v556
          %v558 = vpop.f32.mrb[0].mxu0
          %v559 = vpop.f32.mrb[0].mxu0
          %v560 = vpop.f32.mrb[0].mxu0
          %561 = vdwg.mxu0
          %v562 = vsel %vm461, %v503, -inf
          %563 = vmax.xlane.f32.xlu0 %v562
          %v564 = vpop.xlane.xlu0 %563
          %v565 = vsub.f32 %v503, %v564
          %v566 = vmul.f32 %v565, 1.442695
          %v567 = vpow.pop %v566
          %v568 = vsel %vm461, %v567, 0.0
          %569 = vadd.xlane.f32.xlu0 %v568
          %v570 = vpop.xlane.xlu0 %569
          %v571 = vrcp.pop %v570
          %v572 = vmul.f32 %v567, %v571
          %v573 = vsel %vm461, %v557, -inf
          %574 = vmax.xlane.f32.xlu0 %v573
          %v575 = vpop.xlane.xlu0 %574
          %v576 = vsub.f32 %v557, %v575
          %v577 = vmul.f32 %v576, 1.442695
          %v578 = vpow.pop %v577
          %v579 = vsel %vm461, %v578, 0.0
          %580 = vadd.xlane.f32.xlu0 %v579
          %v581 = vpop.xlane.xlu0 %580
          %v582 = vrcp.pop %v581
          %v583 = vmul.f32 %v578, %v582
          %s584 = sld [smem:[#allocation5 + %s389]]
          %v585 = vstv %s584
          %v586 = vmul.f32 %v585, %v583
          %v587 = vsub.f32 %v572, %v586
          %v588 = vmul.f32 %v587, 1.442695
          %v589 = vpow.pop %v588
          %v590 = vsel %vm461, %v589, 0.0
          %591 = vadd.xlane.f32.xlu0 %v590
          %v592 = vpop.xlane.xlu0 %591
          %v593 = vrcp.pop %v592
          %v594 = vmul.f32 %v589, %v593
          %v595 = vpack.c.bf16 %v594, %v594
          %596 = vrot.lane.b32.xlu0 %v513, 112
          %v597 = vpop.permute.xlu0 %596
          %v599 = vsel %vm461, %v595, 0
          %vm601 = vcmask 1043456
          %v603 = vsel %vm601, %v597, 0
          %605 = vmatprep.subr.bf16.mxu0 0
          %606 = vmatpush1.bf16.msra.mxu0 %v603
          %607 = vmatprep.subr.bf16.mxu0 0
          %608 = vmatpush1.bf16.msra.mxu0 0
          %609 = vmatprep.subr.bf16.mxu0 0
          %610 = vmatpush1.bf16.msra.mxu0 0
          %611 = vmatprep.subr.bf16.mxu0 0
          %612 = vmatpush1.bf16.msra.mxu0 0
          %613 = vmatprep.subr.bf16.mxu0 0
          %614 = vmatpush1.bf16.msra.mxu0 0
          %615 = vmatprep.subr.bf16.mxu0 0
          %616 = vmatpush1.bf16.msra.mxu0 0
          %617 = vmatprep.subr.bf16.mxu0 0
          %618 = vmatpush1.bf16.msra.mxu0 0
          %619 = vmatprep.subr.bf16.mxu0 0
          %620 = vmatpush1.bf16.msra.mxu0 0
          %621 = vmatprep.subr.bf16.mxu0 0
          %622 = vmatpush1.bf16.msra.mxu0 0
          %623 = vmatprep.subr.bf16.mxu0 0
          %624 = vmatpush1.bf16.msra.mxu0 0
          %625 = vmatprep.subr.bf16.mxu0 0
          %626 = vmatpush1.bf16.msra.mxu0 0
          %627 = vmatprep.subr.bf16.mxu0 0
          %628 = vmatpush1.bf16.msra.mxu0 0
          %629 = vmatprep.subr.bf16.mxu0 0
          %630 = vmatpush1.bf16.msra.mxu0 0
          %631 = vmatprep.subr.bf16.mxu0 0
          %632 = vmatpush1.bf16.msra.mxu0 0
          %633 = vmatprep.subr.bf16.mxu0 0
          %634 = vmatpush1.bf16.msra.mxu0 0
          %635 = vmatprep.subr.bf16.mxu0 0
          %636 = vmatpush1.bf16.msra.mxu0 0
          %637 = vmatprep.mubr.bf16.mxu0 0
          %638 = vmatmul.mubr.bf16.gmra.mrb[0].mxu0 %v599
          %v639 = vpop.f32.mrb[0].mxu0
          %v640 = vadd.f32 0.0, %v639
          %v641 = vpop.f32.mrb[0].mxu0
          %v642 = vpop.f32.mrb[0].mxu0
          %v643 = vpop.f32.mrb[0].mxu0
          %644 = vdwg.mxu0
          %v645 = vld [vmem:[#allocation4] sm:$0xff]
          %v646 = vmul.f32 %v640, %v640
          %v647 = vsel %vm461, %v646, 0.0
          %648 = vadd.xlane.f32.xlu0 %v647
          %v649 = vpop.xlane.xlu0 %648
          %v650 = vadd.f32 %v645, %v649
          %651 = vst.msk [vmem:[#allocation4] sm:$0xff] %vm386, %v650
          %v652 = vpack.c.bf16 %v640, %v640
          %s653 = smul.addr %s389, 4
          %s654 = scalar_lea.vmem [#allocation3], %s653
          %vm655 = vcmask 60416
          %656 = vst.msk [vmem:[%s654] sm:$0xf] %vm655, %v652
        $region64: #{differential_attention.1} parent=43 // loop_footer
          %s393 = sadd.s32 1, %s389
        $region65: #{differential_attention.1} parent=43 // loop_footer_branch
          %388 = sbr.rel target = $region61
        $region66: #{differential_attention.1} parent=43 // loop_exit
          _
        %v657 = vld [vmem:[#allocation3] sm:$0xf]
        %s658 = scalar_lea.vmem [#allocation3], 4
        %v659 = vld [vmem:[%s658] sm:$0xf]
        %s660 = scalar_lea.vmem [#allocation3], 8
        %v661 = vld [vmem:[%s660] sm:$0xf]
        %s662 = scalar_lea.vmem [#allocation3], 12
        %v663 = vld [vmem:[%s662] sm:$0xf]
        %v665 = vunpack.c.l.b16 %v659
        %v666 = vpack.c.b16 %v665, %v665
        %667 = vrot.lane.b32.xlu0 %v666, 8
        %v668 = vpop.permute.xlu0 %667
        %v670 = vunpack.c.l.b16 %v661
        %v671 = vpack.c.b16 %v670, %v670
        %672 = vrot.lane.b32.xlu0 %v671, 16
        %v673 = vpop.permute.xlu0 %672
        %v675 = vunpack.c.l.b16 %v663
        %v676 = vpack.c.b16 %v675, %v675
        %677 = vrot.lane.b32.xlu0 %v676, 24
        %v678 = vpop.permute.xlu0 %677
        %vm679 = vcmask 64512
        %v682 = vsel %vm679, %v657, %v668
        %vm683 = vcmask 130048
        %v685 = vsel %vm683, %v682, %v673
        %vm686 = vcmask 195584
        %v688 = vsel %vm686, %v685, %v678
        %v689 = vld [vmem:[%s4] sm:$0xf]
        %v690 = vld [vmem:[%s4 + $0x4] sm:$0xf]
        %v691 = vld [vmem:[%s4 + $0x8] sm:$0xf]
        %v692 = vld [vmem:[%s4 + $0xc] sm:$0xf]
        %v697 = vunpack.c.l.b16 %v689
        %v698 = vunpack.c.l.b16 %v690
        %v699 = vunpack.c.l.b16 %v691
        %v700 = vunpack.c.l.b16 %v692
        %v701 = vpack.c.b16 %v698, %v697
        %v702 = vpack.c.b16 %v700, %v699
        %vm705 = vcmask 261120
        %v706 = vsel %vm705, %v688, 0
        %708 = vmatprep.subr.bf16.mxu0 0
        %709 = vmatpush1.bf16.msra.mxu0 %v701
        %710 = vmatprep.subr.bf16.mxu0 0
        %711 = vmatpush1.bf16.msra.mxu0 %v702
        %712 = vmatprep.subr.bf16.mxu0 0
        %713 = vmatpush1.bf16.msra.mxu0 0
        %714 = vmatprep.subr.bf16.mxu0 0
        %715 = vmatpush1.bf16.msra.mxu0 0
        %716 = vmatprep.subr.bf16.mxu0 0
        %717 = vmatpush1.bf16.msra.mxu0 0
        %718 = vmatprep.subr.bf16.mxu0 0
        %719 = vmatpush1.bf16.msra.mxu0 0
        %720 = vmatprep.subr.bf16.mxu0 0
        %721 = vmatpush1.bf16.msra.mxu0 0
        %722 = vmatprep.subr.bf16.mxu0 0
        %723 = vmatpush1.bf16.msra.mxu0 0
        %724 = vmatprep.subr.bf16.mxu0 0
        %725 = vmatpush1.bf16.msra.mxu0 0
        %726 = vmatprep.subr.bf16.mxu0 0
        %727 = vmatpush1.bf16.msra.mxu0 0
        %728 = vmatprep.subr.bf16.mxu0 0
        %729 = vmatpush1.bf16.msra.mxu0 0
        %730 = vmatprep.subr.bf16.mxu0 0
        %731 = vmatpush1.bf16.msra.mxu0 0
        %732 = vmatprep.subr.bf16.mxu0 0
        %733 = vmatpush1.bf16.msra.mxu0 0
        %734 = vmatprep.subr.bf16.mxu0 0
        %735 = vmatpush1.bf16.msra.mxu0 0
        %736 = vmatprep.subr.bf16.mxu0 0
        %737 = vmatpush1.bf16.msra.mxu0 0
        %738 = vmatprep.subr.bf16.mxu0 0
        %739 = vmatpush1.bf16.msra.mxu0 0
        %740 = vmatprep.mubr.bf16.mxu0 0
        %741 = vmatmul.mubr.bf16.gmra.mrb[0].mxu0 %v706
        %v742 = vpop.f32.mrb[0].mxu0
        %v743 = vadd.f32 0.0, %v742
        %v744 = vpop.f32.mrb[0].mxu0
        %v745 = vpop.f32.mrb[0].mxu0
        %v746 = vpop.f32.mrb[0].mxu0
        %747 = vdwg.mxu0
        %v748 = vld [vmem:[#allocation4] sm:$0xff]
        %v749 = vmul.f32 %v748, 0.03125
        %v750 = vadd.f32 %v749, 1e-06
        %v751 = vrsqrt.pop %v750
        %753 = vset.pattern.permute.xlu0 0
        %754 = vperm.xlu0 %753, %v751
        %v755 = vpop.permute.xlu0 %754
        %v757 = vmul.f32 %v743, %v755
        %758 = vst.msk [vmem:[%s291] sm:$0xff] %vm705, %v757
        %s759 = sand.u32 %s181, 1
        %s760 = scalar_lea.sflag [#allocation6], %s759
        %s761 = sand.u32 %s181, 1
        %s762 = smul.addr %s761, 8
        %s763 = scalar_lea.vmem [#allocation8], %s762
        // Predicated region
        $region67: #{differential_attention.1} parent=43 // pred_check
          %p764 = pneg %p191
        $region68: #{differential_attention.1} parent=43 // pred_check_branch
          %766 = sbr.rel (%p764) target = $region70
        $region69: #{differential_attention.1} parent=43 // pred_region
          %s768 = ssub.s32 128, 128
          %769 = vsyncadd %s760, %s768
          %s770 = sadd.s32 %s26, %s25
          %s771 = smul.addr %s770, 128
          %s772 = scalar_lea.hbm %s6, %s771
          %s774 = sshll.u32 %s763, 4
          %s775 = int_to_ptr.vmem [resolvable:$true] %s774
          %777 = dma.vmem_to_hbm [thread:$0]  %s775, 128, %s772, %s760
        $region70: #{differential_attention.1} parent=43 // pred_fallthru
          _
      $region44: #{differential_attention.1} parent=5 // pred_fallthru
        _
      %p778 = scmp.le.s32.totalorder 2, %s16
      // Predicated region
      $region71: #{differential_attention.1} parent=5 // pred_check
        %p779 = pneg %p778
      $region72: #{differential_attention.1} parent=5 // pred_check_branch
        %781 = sbr.rel (%p779) target = $region74
      $region73: #{differential_attention.1} parent=5 // pred_region
        %s782 = ssub.s32 %s16, 2
        // Predicated region
        $region75: #{differential_attention.1} parent=73 // pred_check
          %p783 = pneg %p197
        $region76: #{differential_attention.1} parent=73 // pred_check_branch
          %785 = sbr.rel (%p783) target = $region78
        $region77: #{differential_attention.1} parent=73 // pred_region
          %s786 = sand.u32 %s182, 1
          %s787 = scalar_lea.sflag [#allocation6], %s786
          %s788 = sand.u32 %s182, 1
          %s789 = smul.addr %s788, 8
          %s790 = scalar_lea.vmem [#allocation8], %s789
          %791 = dma.done %s787, 128
        $region78: #{differential_attention.1} parent=73 // pred_fallthru
          _
      $region74: #{differential_attention.1} parent=5 // pred_fallthru
        _
    $region6: #{differential_attention.1} parent=1 // loop_footer
      %s20 = sadd.s32 1, %s16
    $region7: #{differential_attention.1} parent=1 // loop_footer_branch
      %15 = sbr.rel target = $region3
    $region8: #{differential_attention.1} parent=1 // loop_exit
      _
    %792 = vsyncpa [#allocation6], 1
    %s793 = scalar_lea.sflag [#allocation6], 1
    %794 = vsyncpa %s793, 1
    %795 = vsyncpa [#allocation7], 1
    %s796 = scalar_lea.sflag [#allocation7], 1
    %797 = vsyncpa %s796, 1

</llo_original>
